<compile_context>
chip_gen: v6e
topology: v6e:2x2x1
jax: 0.10.0
libtpu: 0.0.40
codegen_flags: <defaults>
</compile_context>

<pallas_src>
import math
import functools

import jax
import jax.numpy as jnp
from jax.experimental import pallas as pl
from jax.experimental.pallas import tpu as pltpu

# Module-level negative-slope constant referenced by the PyTorch spec
# (nn.LeakyReLU(ALPHA)); StyleGAN convention is 0.2.
ALPHA = 0.2

_TARGET_BLOCK_BYTES = 4 * 1024 * 1024   # ~4 MiB payload per grid step
_VMEM_LIMIT_BYTES = 32 * 1024 * 1024    # 2 bufs x (in+out) x 4 MiB = 16 MiB << limit
_LANE_CANDIDATES = (1024, 512, 384, 256, 128)
_FALLBACK_LANE = 512


def _sublane_multiple(dtype) -> int:
    itemsize = jnp.dtype(dtype).itemsize
    return {4: 8, 2: 16, 1: 32}.get(itemsize, 8)


def _leaky_relu_kernel(x_ref, o_ref, *, alpha, gain, clamp):
    x = x_ref[...]  # native dtype, no forced upcast
    # Fold gain into the selected scale: one select + one mul per element (VPU).
    scale = jnp.where(x >= 0, gain, alpha * gain).astype(x.dtype)
    y = x * scale
    if clamp is not None:
        y = jnp.clip(y, -clamp, clamp)
    o_ref[...] = y.astype(o_ref.dtype)


def leaky_relu(x, *, gain=1.0, clamp=None, alpha=ALPHA):
    """LeakyReLU(alpha) * gain, optionally clamped to [-clamp, clamp]."""
    orig_shape = x.shape
    dtype = x.dtype
    n = x.size
    if n == 0:
        return x

    # Fast path: pick the largest lane width (multiple of 128) dividing n, so the
    # flatten is a free reshape and no pad/slice HBM passes are needed.
    lane = next((c for c in _LANE_CANDIDATES if n % c == 0), None)
    padded = lane is None
    if padded:
        lane = _FALLBACK_LANE

    itemsize = jnp.dtype(dtype).itemsize
    sub = _sublane_multiple(dtype)
    rows = pl.cdiv(n, lane)

    if rows >= 2 * sub:
        # ~_TARGET_BLOCK_BYTES per step, but keep >= 2 grid steps so v7x's two
        # TensorCores both stream (the "parallel" grid axis shards across them).
        target_rows = max(sub, (_TARGET_BLOCK_BYTES // (lane * itemsize)) // sub * sub)
        half_rows = ((pl.cdiv(rows, 2) + sub - 1) // sub) * sub
        block_rows = min(target_rows, half_rows)
    else:
        # Tiny input: single block equal to the full array dims (layout-legal).
        block_rows = rows

    if padded:
        # Rare slow path (n not a multiple of 128): pad only up to rows*lane.
        x_flat = jnp.pad(x.reshape(-1), (0, rows * lane - n))
        x2d = x_flat.reshape(rows, lane)
    else:
        x2d = x.reshape(rows, lane)

    kernel = functools.partial(
        _leaky_relu_kernel,
        alpha=float(alpha),
        gain=float(gain),
        clamp=float(clamp) if clamp is not None else None,
    )

    out2d = pl.pallas_call(
        kernel,
        out_shape=jax.ShapeDtypeStruct((rows, lane), dtype),
        grid_spec=pltpu.PrefetchScalarGridSpec(
            num_scalar_prefetch=0,
            grid=(pl.cdiv(rows, block_rows),),
            in_specs=[pl.BlockSpec((block_rows, lane), lambda i: (i, 0))],
            out_specs=pl.BlockSpec((block_rows, lane), lambda i: (i, 0)),
        ),
        compiler_params=pltpu.CompilerParams(
            dimension_semantics=("parallel",),
            vmem_limit_bytes=_VMEM_LIMIT_BYTES,
        ),
        cost_estimate=pl.CostEstimate(
            flops=3 * n,
            transcendentals=0,
            bytes_accessed=2 * n * itemsize,
        ),
    )(x2d)

    if padded:
        return out2d.reshape(-1)[:n].reshape(orig_shape)
    return out2d.reshape(orig_shape)


def _ref(x, gain, clamp, alpha=ALPHA):
    y = jnp.where(x >= 0, x, alpha * x) * gain
    if clamp is None:
        return y
    return jnp.clip(y, -clamp, clamp)


if __name__ == "__main__":
    gain = math.sqrt(2.0)
    clamp = 0.5
    key = jax.random.PRNGKey(0)

    # Small shape consistent with the module (batch=2, channels=4, spatial=16).
    x = jax.random.normal(key, (2, 4, 16, 16), jnp.float32)

    # Clamped path (fast, unpadded lane path: 2048 % 1024 == 0).
    out = jax.block_until_ready(leaky_relu(x, gain=gain, clamp=clamp))
    assert out.shape == x.shape and out.dtype == x.dtype
    assert jnp.allclose(out, _ref(x, gain, clamp), atol=1e-6, rtol=1e-5)

    # clamp=None path.
    out2 = jax.block_until_ready(leaky_relu(x, gain=gain, clamp=None))
    assert jnp.allclose(out2, _ref(x, gain, None), atol=1e-6, rtol=1e-5)

    # Multi-block path (rows >= 2*sublane -> 2 grid steps).
    k1, k2 = jax.random.split(key)
    xb = jax.random.normal(k1, (8, 8, 32, 128), jnp.float32)
    outb = jax.block_until_ready(leaky_relu(xb, gain=gain, clamp=clamp))
    assert jnp.allclose(outb, _ref(xb, gain, clamp), atol=1e-6, rtol=1e-5)

    # Odd-sized input (n % 128 != 0): exercises the rare pad fallback path.
    xo = jax.random.normal(k2, (3, 5, 7, 11), jnp.float32)
    outo = jax.block_until_ready(leaky_relu(xo, gain=gain, clamp=clamp))
    assert jnp.allclose(outo, _ref(xo, gain, clamp), atol=1e-6, rtol=1e-5)

    print("KERNEL_OK")
</pallas_src>

<mosaic_0001>
module attributes {stable_mosaic.version = 11 : i64} {
  func.func @_leaky_relu_kernel(%arg0: i32, %arg1: memref<2x1024xf32, #tpu.memory_space<vmem>>, %arg2: memref<2x1024xf32, #tpu.memory_space<vmem>>) attributes {dimension_semantics = [#tpu.dimension_semantics<parallel>], iteration_bounds = array<i64: 1>, scalar_prefetch = 0 : i64, scratch_operands = 0 : i64, tpu.core_type = #tpu.core_type<tc>, window_params = [{transform_indices = @transform_0, window_bounds = array<i64: 2, 1024>}, {transform_indices = @transform_1, window_bounds = array<i64: 2, 1024>}]} {
    %c0 = arith.constant 0 : index
    %c0_0 = arith.constant 0 : index
    %0 = vector.load %arg1[%c0, %c0_0] : memref<2x1024xf32, #tpu.memory_space<vmem>>, vector<2x1024xf32>
    %cst = arith.constant 0.000000e+00 : f32
    %1 = vector.broadcast %cst : f32 to vector<2x1024xf32>
    %2 = arith.cmpf oge, %0, %1 : vector<2x1024xf32>
    %cst_1 = arith.constant 1.41421354 : f32
    %cst_2 = arith.constant 0.282842726 : f32
    %3 = vector.broadcast %cst_1 : f32 to vector<2x1024xf32>
    %4 = vector.broadcast %cst_2 : f32 to vector<2x1024xf32>
    %5 = arith.select %2, %3, %4 : vector<2x1024xi1>, vector<2x1024xf32>
    %6 = arith.mulf %0, %5 : vector<2x1024xf32>
    %cst_3 = arith.constant -5.000000e-01 : f32
    %cst_4 = arith.constant 5.000000e-01 : f32
    %7 = vector.broadcast %cst_3 : f32 to vector<2x1024xf32>
    %8 = arith.maximumf %7, %6 : vector<2x1024xf32>
    %9 = vector.broadcast %cst_4 : f32 to vector<2x1024xf32>
    %10 = arith.minimumf %9, %8 : vector<2x1024xf32>
    %c0_5 = arith.constant 0 : index
    %c0_6 = arith.constant 0 : index
    %11 = vector.load %arg2[%c0_5, %c0_6] : memref<2x1024xf32, #tpu.memory_space<vmem>>, vector<2x1024xf32>
    tpu.vector_store %arg2[%c0_5, %c0_6], %10 {strides = array<i32>} : memref<2x1024xf32, #tpu.memory_space<vmem>>, vector<2x1024xf32>,
    return
  }
  func.func @transform_0(%arg0: i32) -> (i32, i32) {
    %c0_i32 = arith.constant 0 : i32
    %c0_i32_0 = arith.constant 0 : i32
    return %arg0, %c0_i32 : i32, i32
  }
  func.func @transform_1(%arg0: i32) -> (i32, i32) {
    %c0_i32 = arith.constant 0 : i32
    %c0_i32_0 = arith.constant 0 : i32
    return %arg0, %c0_i32 : i32, i32
  }
}

</mosaic_0001>

<llo_original>
// kernel: tpu_custom_call.1
$region0: #{tpu_custom_call.1}
  #allocation0 [shape = 'u32[]', space=smem, size = 0x4, offset = 0x4, fixed_abs, tag = 'smem constant byte address 0x4 - core index']
  #allocation1 [shape = 'u32[144,128]{1,0:T(1,128)}', space=vmem, size = 0x12000, scoped, tag = 'internal scratch']
  %s0 = inlined_call_operand.hbm [shape: f32[2,1024], index: 0, kind: input, shape index: {}]
  %s1 = inlined_call_operand.hbm [shape: f32[2,1024], index: 1, kind: output, shape index: {}]
  %s2 = sld [smem:[#allocation0]]
  $region18: #{tpu_custom_call.1} parent=0
    _
  %s4 = ssub.s32 1, %s2
  %s5 = scalar_select 0, %s4, %s2
  $region1: #{tpu_custom_call.1} parent=0
    #allocation2 [shape = 'u8[8192]{0}', space=vmem, size = 0x2000, scoped, tag = 'input window, operand 0, single buffered']
    #allocation3 [shape = 's32[1]{0}', space=sflag, size = 0x4, scoped, tag = 'scoped memory for tpu_custom_call.1']
    #allocation4 [shape = 's32[1]{0}', space=sflag, size = 0x4, scoped, tag = 'scoped memory for tpu_custom_call.1']
    #allocation5 [shape = 'u8[8192]{0}', space=vmem, size = 0x2000, scoped, tag = 'output window, operand 0, single buffered']
    %6 = vsyncpa [#allocation3], 0
    %7 = vsyncpa [#allocation4], 0
    // Predicated region
    $region2: #{tpu_custom_call.1} parent=1 // pred_check
      _
    $region3: #{tpu_custom_call.1} parent=1 // pred_check_branch
      %9 = sbr.rel (0) target = $region5
    $region4: #{tpu_custom_call.1} parent=1 // pred_region
      %s11 = ssub.s32 256, 256
      %12 = vsyncadd [#allocation3], %s11
      %s14 = sshll.u32 [#allocation2], 4
      %s15 = int_to_ptr.vmem [resolvable:$true] %s14
      %17 = dma.hbm_to_vmem [thread:$0]  %s0, 256, %s15, [#allocation3]
    $region5: #{tpu_custom_call.1} parent=1 // pred_fallthru
      _
    // Predicated region
    $region6: #{tpu_custom_call.1} parent=1 // pred_check
      _
    $region7: #{tpu_custom_call.1} parent=1 // pred_check_branch
      %19 = sbr.rel (0) target = $region9
    $region8: #{tpu_custom_call.1} parent=1 // pred_region
      %20 = dma.done [#allocation3], 256
    $region9: #{tpu_custom_call.1} parent=1 // pred_fallthru
      _
    %v21 = vld [vmem:[#allocation2] sm:$0xff]
    %v22 = vld [vmem:[#allocation2 + $0x8] sm:$0xff]
    %vm23 = vcmp.ge.f32.partialorder %v21, 0.0
    %vm24 = vcmp.ge.f32.partialorder %v22, 0.0
    %v25 = vsel %vm23, 1.4142135, 0.28284273
    %v26 = vsel %vm24, 1.4142135, 0.28284273
    %v27 = vmul.f32 %v21, %v25
    %v28 = vmul.f32 %v22, %v26
    %v29 = vmax.f32 %v27, -0.5
    %v30 = vmax.f32 %v28, -0.5
    %v31 = vmin.f32 %v29, 0.5
    %v32 = vmin.f32 %v30, 0.5
    %33 = vst [vmem:[#allocation5] sm:$0xff] %v31
    %34 = vst [vmem:[#allocation5 + $0x8] sm:$0xff] %v32
    // Predicated region
    $region10: #{tpu_custom_call.1} parent=1 // pred_check
      _
    $region11: #{tpu_custom_call.1} parent=1 // pred_check_branch
      %36 = sbr.rel (0) target = $region13
    $region12: #{tpu_custom_call.1} parent=1 // pred_region
      %s38 = ssub.s32 256, 256
      %39 = vsyncadd [#allocation4], %s38
      %s41 = sshll.u32 [#allocation5], 4
      %s42 = int_to_ptr.vmem [resolvable:$true] %s41
      %44 = dma.vmem_to_hbm [thread:$0]  %s42, 256, %s1, [#allocation4]
    $region13: #{tpu_custom_call.1} parent=1 // pred_fallthru
      _
    // Predicated region
    $region14: #{tpu_custom_call.1} parent=1 // pred_check
      _
    $region15: #{tpu_custom_call.1} parent=1 // pred_check_branch
      %46 = sbr.rel (0) target = $region17
    $region16: #{tpu_custom_call.1} parent=1 // pred_region
      %47 = dma.done [#allocation4], 256
    $region17: #{tpu_custom_call.1} parent=1 // pred_fallthru
      _
    %48 = vsyncpa [#allocation3], 1
    %49 = vsyncpa [#allocation4], 1

</llo_original>
